<compile_context>
chip_gen: v5e
topology: v5e:2x2
jax: 0.10.0
libtpu: 0.0.40
codegen_flags: <defaults>
</compile_context>

<pallas_src>
import math

import jax
import jax.numpy as jnp
import numpy as np
from jax import lax
from jax.experimental import pallas as pl
from jax.experimental.pallas import tpu as pltpu


def _round_up(n, m):
    return (n + m - 1) // m * m


def _pick_time_block(seq, target):
    tb = min(target, seq)
    while seq % tb != 0:
        tb -= 1
    return tb


# ----------------------------------------------------------------------------
# Hoisted input projection: gates_x = x @ W_ih^T + bias  (parallel grid)
# ----------------------------------------------------------------------------
def _in_proj_kernel(x_ref, wih_ref, b_ref, gx_ref):
    gx_ref[...] = (
        jnp.dot(x_ref[...], wih_ref[...], preferred_element_type=jnp.float32)
        + b_ref[...]
    ).astype(gx_ref.dtype)


def _input_projection(x2d, wih_t, bias, row_block=256):
    """x2d: (rows, in_dim), wih_t: (in_dim, 4*hid), bias: (1, 4*hid) -> f32 gates."""
    rows, in_dim = x2d.shape
    four_hid = wih_t.shape[1]
    if rows >= row_block:
        rows_pad = _round_up(rows, row_block)
        rb = row_block
    else:
        rows_pad = _round_up(rows, 8)
        rb = rows_pad
    if rows_pad != rows:
        x2d = jnp.pad(x2d, ((0, rows_pad - rows), (0, 0)))

    gx = pl.pallas_call(
        _in_proj_kernel,
        out_shape=jax.ShapeDtypeStruct((rows_pad, four_hid), jnp.float32),
        grid_spec=pltpu.PrefetchScalarGridSpec(
            num_scalar_prefetch=0,
            grid=(rows_pad // rb,),
            in_specs=[
                pl.BlockSpec((rb, in_dim), lambda r: (r, 0)),
                pl.BlockSpec((in_dim, four_hid), lambda r: (0, 0)),
                pl.BlockSpec((1, four_hid), lambda r: (0, 0)),
            ],
            out_specs=pl.BlockSpec((rb, four_hid), lambda r: (r, 0)),
        ),
        compiler_params=pltpu.CompilerParams(
            dimension_semantics=("parallel",),
            vmem_limit_bytes=48 * 1024 * 1024,
        ),
    )(x2d, wih_t, bias)
    return gx[:rows]


# ----------------------------------------------------------------------------
# Recurrent kernel: per grid step, T_BLOCK timesteps of h@W_hh^T + gate math.
# h/c carried in f32 VMEM scratch across grid iterations.
# ----------------------------------------------------------------------------
def _lstm_recurrent_kernel(gx_ref, h0_ref, c0_ref, whh_ref,
                           y_ref, hn_ref, cn_ref, h_sc, c_sc):
    tb = pl.program_id(0)
    t_block = gx_ref.shape[0]
    hid = h_sc.shape[-1]

    @pl.when(tb == 0)
    def _():
        h_sc[...] = h0_ref[...].astype(jnp.float32)
        c_sc[...] = c0_ref[...].astype(jnp.float32)

    def step(s, carry):
        h, c = carry
        # Only the recurrent projection runs per step; input proj + bias are
        # already folded into gx_ref.
        gates = gx_ref[s].astype(jnp.float32) + jnp.dot(
            h.astype(whh_ref.dtype), whh_ref[...],
            preferred_element_type=jnp.float32)
        i = jax.nn.sigmoid(gates[:, 0 * hid:1 * hid])
        f = jax.nn.sigmoid(gates[:, 1 * hid:2 * hid])
        g = jnp.tanh(gates[:, 2 * hid:3 * hid])
        o = jax.nn.sigmoid(gates[:, 3 * hid:4 * hid])
        c_new = f * c + i * g
        h_new = o * jnp.tanh(c_new)
        y_ref[s] = h_new.astype(y_ref.dtype)
        return (h_new, c_new)

    h, c = lax.fori_loop(0, t_block, step, (h_sc[...], c_sc[...]), unroll=True)
    h_sc[...] = h
    c_sc[...] = c

    # hn/cn are resident accumulator blocks; write them only once.
    @pl.when(tb == pl.num_programs(0) - 1)
    def _():
        hn_ref[...] = h
        cn_ref[...] = c


def lstm_layer_pallas(x, h0, c0, w_ih, w_hh, b_ih, b_hh,
                      t_block=8, mxu_dtype=None):
    """One torch.nn.LSTM(num_layers=1) layer. x: (seq, bsz, in_dim).

    Returns (y (seq,bsz,hid) in x.dtype, h_n (bsz,hid) f32, c_n (bsz,hid) f32).
    """
    seq, bsz, in_dim = x.shape
    hid = h0.shape[-1]

    wih_t = jnp.transpose(w_ih)                    # (in_dim, 4*hid)
    whh_t = jnp.transpose(w_hh)                    # (hid, 4*hid)
    bias = (b_ih + b_hh).reshape(1, 4 * hid).astype(jnp.float32)

    if mxu_dtype is not None:
        # bf16 MXU operands, f32 accumulation & gate math.
        wih_t = wih_t.astype(mxu_dtype)
        whh_t = whh_t.astype(mxu_dtype)
        x_proj = x.astype(mxu_dtype)
    else:
        x_proj = x

    # (1) Hoisted input projection: one big matmul over all timesteps.
    gates_x = _input_projection(
        x_proj.reshape(seq * bsz, in_dim), wih_t, bias
    ).reshape(seq, bsz, 4 * hid)

    tb = _pick_time_block(seq, t_block)

    y, hn, cn = pl.pallas_call(
        _lstm_recurrent_kernel,
        out_shape=(
            jax.ShapeDtypeStruct((seq, bsz, hid), x.dtype),
            jax.ShapeDtypeStruct((bsz, hid), jnp.float32),
            jax.ShapeDtypeStruct((bsz, hid), jnp.float32),
        ),
        grid_spec=pltpu.PrefetchScalarGridSpec(
            num_scalar_prefetch=0,
            grid=(seq // tb,),
            in_specs=[
                pl.BlockSpec((tb, bsz, 4 * hid), lambda t: (t, 0, 0)),   # gates_x
                pl.BlockSpec((bsz, hid), lambda t: (0, 0)),              # h0
                pl.BlockSpec((bsz, hid), lambda t: (0, 0)),              # c0
                pl.BlockSpec((hid, 4 * hid), lambda t: (0, 0)),          # W_hh^T
            ],
            out_specs=(
                pl.BlockSpec((tb, bsz, hid), lambda t: (t, 0, 0)),       # y
                pl.BlockSpec((bsz, hid), lambda t: (0, 0)),              # h_n
                pl.BlockSpec((bsz, hid), lambda t: (0, 0)),              # c_n
            ),
            scratch_shapes=[
                pltpu.VMEM((bsz, hid), jnp.float32),
                pltpu.VMEM((bsz, hid), jnp.float32),
            ],
        ),
        compiler_params=pltpu.CompilerParams(
            dimension_semantics=("arbitrary",),     # time recurrence: sequential
            vmem_limit_bytes=48 * 1024 * 1024,
        ),
    )(gates_x, h0, c0, whh_t)
    return y, hn, cn


# ----------------------------------------------------------------------------
# RNNModel (rnn_type='LSTM', num_features=0, tie_weights=False, eval mode)
# ----------------------------------------------------------------------------
def init_rnn_model_params(key, ntoken, ninp, nhid, nlayers):
    initrange = 0.1
    keys = jax.random.split(key, 1 + 4 * nlayers)
    params = {
        "encoder": jax.random.uniform(
            keys[0], (ntoken, ninp), jnp.float32, -initrange, initrange),
        "rnns": [],
    }
    for l in range(nlayers):
        in_dim = ninp if l == 0 else nhid
        hid = nhid                          # tie_weights=False
        stdv = 1.0 / math.sqrt(hid)         # torch.nn.LSTM default init
        k = keys[1 + 4 * l: 1 + 4 * (l + 1)]
        params["rnns"].append({
            "w_ih": jax.random.uniform(k[0], (4 * hid, in_dim), jnp.float32, -stdv, stdv),
            "w_hh": jax.random.uniform(k[1], (4 * hid, hid), jnp.float32, -stdv, stdv),
            "b_ih": jax.random.uniform(k[2], (4 * hid,), jnp.float32, -stdv, stdv),
            "b_hh": jax.random.uniform(k[3], (4 * hid,), jnp.float32, -stdv, stdv),
        })
    # Decoder exists in the module but is not applied inside forward().
    return params


def init_hidden(bsz, nhid, nlayers):
    return [(jnp.zeros((1, bsz, nhid), jnp.float32),
             jnp.zeros((1, bsz, nhid), jnp.float32)) for _ in range(nlayers)]


def rnn_model_forward(params, tokens, hidden, t_block=8, mxu_dtype=None):
    """Eval-mode RNNModel.forward: returns (result, new_hidden).
    tokens: (seq, bsz) int32; result: (seq*bsz, nhid)."""
    # embedded_dropout(dropout=0) + LockedDropout are identity at eval.
    emb = jnp.take(params["encoder"], tokens, axis=0)   # (seq, bsz, ninp)
    raw_output = emb
    new_hidden = []
    for l, p in enumerate(params["rnns"]):
        h0, c0 = hidden[l]
        raw_output, hn, cn = lstm_layer_pallas(
            raw_output, h0[0], c0[0], p["w_ih"], p["w_hh"], p["b_ih"], p["b_hh"],
            t_block=t_block, mxu_dtype=mxu_dtype)
        new_hidden.append((hn[None], cn[None]))         # kept in float32
    result = raw_output.reshape(raw_output.shape[0] * raw_output.shape[1],
                                raw_output.shape[2])
    return result, new_hidden


# ----------------------------------------------------------------------------
# Pure-JAX reference for verification
# ----------------------------------------------------------------------------
def _lstm_layer_ref(x, h0, c0, w_ih, w_hh, b_ih, b_hh):
    hid = h0.shape[-1]

    def step(carry, x_t):
        h, c = carry
        gates = x_t @ w_ih.T + b_ih + h @ w_hh.T + b_hh
        i = jax.nn.sigmoid(gates[:, 0 * hid:1 * hid])
        f = jax.nn.sigmoid(gates[:, 1 * hid:2 * hid])
        g = jnp.tanh(gates[:, 2 * hid:3 * hid])
        o = jax.nn.sigmoid(gates[:, 3 * hid:4 * hid])
        c = f * c + i * g
        h = o * jnp.tanh(c)
        return (h, c), h

    (hn, cn), ys = jax.lax.scan(step, (h0, c0), x)
    return ys, hn, cn


def rnn_model_forward_ref(params, tokens, hidden):
    emb = jnp.take(params["encoder"], tokens, axis=0)
    raw_output = emb
    for l, p in enumerate(params["rnns"]):
        h0, c0 = hidden[l]
        raw_output, _, _ = _lstm_layer_ref(
            raw_output, h0[0], c0[0], p["w_ih"], p["w_hh"], p["b_ih"], p["b_hh"])
    return raw_output.reshape(-1, raw_output.shape[-1])


if __name__ == "__main__":
    ntoken, ninp, nhid, nlayers = 32, 32, 32, 2
    seq_len, bsz = 16, 4

    key = jax.random.PRNGKey(0)
    pkey, tkey = jax.random.split(key)
    params = init_rnn_model_params(pkey, ntoken, ninp, nhid, nlayers)
    tokens = jax.random.randint(tkey, (seq_len, bsz), 0, ntoken, dtype=jnp.int32)
    hidden = init_hidden(bsz, nhid, nlayers)

    result, new_hidden = rnn_model_forward(params, tokens, hidden, t_block=8)
    result = jax.block_until_ready(result)
    for h, c in new_hidden:
        jax.block_until_ready(h)
        jax.block_until_ready(c)

    ref = rnn_model_forward_ref(params, tokens, hidden)
    np.testing.assert_allclose(np.asarray(result), np.asarray(ref),
                               rtol=1e-5, atol=1e-5)
    assert result.shape == (seq_len * bsz, nhid)
    assert new_hidden[0][0].dtype == jnp.float32  # state carried in f32

    print("KERNEL_OK")
</pallas_src>

<mosaic_0001>
module attributes {stable_mosaic.version = 11 : i64} {
  func.func @_in_proj_kernel(%arg0: i32, %arg1: memref<64x32xf32, #tpu.memory_space<vmem>>, %arg2: memref<32x128xf32, #tpu.memory_space<vmem>>, %arg3: memref<1x128xf32, #tpu.memory_space<vmem>>, %arg4: memref<64x128xf32, #tpu.memory_space<vmem>>) attributes {dimension_semantics = [#tpu.dimension_semantics<parallel>], iteration_bounds = array<i64: 1>, scalar_prefetch = 0 : i64, scratch_operands = 0 : i64, tpu.core_type = #tpu.core_type<tc>, window_params = [{transform_indices = @transform_0, window_bounds = array<i64: 64, 32>}, {pipeline_mode = #tpu.pipeline_mode<synchronous>, transform_indices = @transform_1, window_bounds = array<i64: 32, 128>}, {pipeline_mode = #tpu.pipeline_mode<synchronous>, transform_indices = @transform_2, window_bounds = array<i64: 1, 128>}, {transform_indices = @transform_3, window_bounds = array<i64: 64, 128>}]} {
    %c0 = arith.constant 0 : index
    %c0_0 = arith.constant 0 : index
    %0 = vector.load %arg1[%c0, %c0_0] : memref<64x32xf32, #tpu.memory_space<vmem>>, vector<64x32xf32>
    %c0_1 = arith.constant 0 : index
    %c0_2 = arith.constant 0 : index
    %1 = vector.load %arg2[%c0_1, %c0_2] : memref<32x128xf32, #tpu.memory_space<vmem>>, vector<32x128xf32>
    %cst = arith.constant dense<0.000000e+00> : vector<64x128xf32>
    %2 = tpu.matmul %0, %1, %cst {dimension_numbers = #tpu.dot_dimension_numbers<[1], [0], [0], [1], [0, 0, 1, 1], [], []>} : vector<64x32xf32>, vector<32x128xf32>, vector<64x128xf32> -> vector<64x128xf32>
    %c0_3 = arith.constant 0 : index
    %c0_4 = arith.constant 0 : index
    %3 = vector.load %arg3[%c0_3, %c0_4] : memref<1x128xf32, #tpu.memory_space<vmem>>, vector<1x128xf32>
    %4 = vector.broadcast %3 : vector<1x128xf32> to vector<64x128xf32>
    %5 = arith.addf %2, %4 : vector<64x128xf32>
    %c0_5 = arith.constant 0 : index
    %c0_6 = arith.constant 0 : index
    %6 = vector.load %arg4[%c0_5, %c0_6] : memref<64x128xf32, #tpu.memory_space<vmem>>, vector<64x128xf32>
    tpu.vector_store %arg4[%c0_5, %c0_6], %5 {strides = array<i32>} : memref<64x128xf32, #tpu.memory_space<vmem>>, vector<64x128xf32>,
    return
  }
  func.func @transform_0(%arg0: i32) -> (i32, i32) {
    %c0_i32 = arith.constant 0 : i32
    %c0_i32_0 = arith.constant 0 : i32
    return %arg0, %c0_i32 : i32, i32
  }
  func.func @transform_1(%arg0: i32) -> (i32, i32) {
    %c0_i32 = arith.constant 0 : i32
    %c0_i32_0 = arith.constant 0 : i32
    %c0_i32_1 = arith.constant 0 : i32
    return %c0_i32, %c0_i32_0 : i32, i32
  }
  func.func @transform_2(%arg0: i32) -> (i32, i32) {
    %c0_i32 = arith.constant 0 : i32
    %c0_i32_0 = arith.constant 0 : i32
    %c0_i32_1 = arith.constant 0 : i32
    return %c0_i32, %c0_i32_0 : i32, i32
  }
  func.func @transform_3(%arg0: i32) -> (i32, i32) {
    %c0_i32 = arith.constant 0 : i32
    %c0_i32_0 = arith.constant 0 : i32
    return %arg0, %c0_i32 : i32, i32
  }
}

</mosaic_0001>

<llo_original>
// kernel: tpu_custom_call.1
$region0: #{tpu_custom_call.1}
  #allocation0 [shape = 'u32[]', space=smem, size = 0x4, offset = 0x4, fixed_abs, tag = 'smem constant byte address 0x4 - core index']
  #allocation1 [shape = 'u32[72,128]{1,0:T(1,128)}', space=vmem, size = 0x9000, scoped, tag = 'internal scratch']
  %s0 = inlined_call_operand.vmem [shape: f32[64,32], index: 0, kind: input, shape index: {}]
  %s1 = inlined_call_operand.vmem [shape: f32[32,128], index: 1, kind: input, shape index: {}]
  %s2 = inlined_call_operand.vmem [shape: f32[1,128], index: 2, kind: input, shape index: {}]
  %s3 = inlined_call_operand.hbm [shape: f32[64,128], index: 3, kind: output, shape index: {}]
  %s4 = sld [smem:[#allocation0]]
  $region22: #{tpu_custom_call.1} parent=0
    _
  %s6 = ssub.s32 1, %s4
  %s7 = scalar_select 0, %s6, %s4
  $region1: #{tpu_custom_call.1} parent=0
    #allocation2 [shape = 'u8[32768]{0}', space=vmem, size = 0x8000, scoped, tag = 'output window, operand 0, single buffered']
    #allocation3 [shape = 's32[1]{0}', space=sflag, size = 0x4, scoped, tag = 'scoped memory for tpu_custom_call.1']
    %8 = vsyncpa [#allocation3], 0
    // Predicated region
    $region2: #{tpu_custom_call.1} parent=1 // pred_check
      _
    $region3: #{tpu_custom_call.1} parent=1 // pred_check_branch
      %10 = sbr.rel (0) target = $region5
    $region4: #{tpu_custom_call.1} parent=1 // pred_region
      _
    $region5: #{tpu_custom_call.1} parent=1 // pred_fallthru
      _
    // Predicated region
    $region6: #{tpu_custom_call.1} parent=1 // pred_check
      _
    $region7: #{tpu_custom_call.1} parent=1 // pred_check_branch
      %12 = sbr.rel (0) target = $region9
    $region8: #{tpu_custom_call.1} parent=1 // pred_region
      _
    $region9: #{tpu_custom_call.1} parent=1 // pred_fallthru
      _
    // Predicated region
    $region10: #{tpu_custom_call.1} parent=1 // pred_check
      _
    $region11: #{tpu_custom_call.1} parent=1 // pred_check_branch
      %14 = sbr.rel (0) target = $region13
    $region12: #{tpu_custom_call.1} parent=1 // pred_region
      _
    $region13: #{tpu_custom_call.1} parent=1 // pred_fallthru
      _
    %v15 = vld [vmem:[%s0] sm:$0xff]
    %v16 = vld [vmem:[%s0 + $0x8] sm:$0xff]
    %v17 = vld [vmem:[%s0 + $0x10] sm:$0xff]
    %v18 = vld [vmem:[%s0 + $0x18] sm:$0xff]
    %v19 = vld [vmem:[%s0 + $0x20] sm:$0xff]
    %v20 = vld [vmem:[%s0 + $0x28] sm:$0xff]
    %v21 = vld [vmem:[%s0 + $0x30] sm:$0xff]
    %v22 = vld [vmem:[%s0 + $0x38] sm:$0xff]
    %v23 = vld [vmem:[%s1] sm:$0xff]
    %v24 = vld [vmem:[%s1 + $0x8] sm:$0xff]
    %v25 = vld [vmem:[%s1 + $0x10] sm:$0xff]
    %v26 = vld [vmem:[%s1 + $0x18] sm:$0xff]
    %v27 = vld [vmem:[%s2] sm:$0x1]
    %v29 = vperm.slane %v27, 0
    %vm31 = vcmask 261120
    %v33 = vsel %vm31, %v15, 0
    %v36 = vsel %vm31, %v16, 0
    %v39 = vsel %vm31, %v17, 0
    %v42 = vsel %vm31, %v18, 0
    %v45 = vsel %vm31, %v19, 0
    %v48 = vsel %vm31, %v20, 0
    %v51 = vsel %vm31, %v21, 0
    %v54 = vsel %vm31, %v22, 0
    %56 = vmatpush.msra.mxu0 0.0
    %57 = vmatpush.msra.mxu0 0.0
    %58 = vmatpush.msra.mxu0 0.0
    %59 = vmatpush.msra.mxu0 0.0
    %60 = vmatpush.msra.mxu0 0.0
    %61 = vmatpush.msra.mxu0 0.0
    %62 = vmatpush.msra.mxu0 0.0
    %63 = vmatpush.msra.mxu0 0.0
    %64 = vmatpush.msra.mxu0 0.0
    %65 = vmatpush.msra.mxu0 0.0
    %66 = vmatpush.msra.mxu0 0.0
    %67 = vmatpush.msra.mxu0 0.0
    %68 = vmatpush.msra.mxu0 %v26
    %69 = vmatpush.msra.mxu0 %v25
    %70 = vmatpush.msra.mxu0 %v24
    %71 = vmatpush.msra.mxu0 %v23
    %72 = vmatmul.f32.gmra.mxu0 %v33
    %v73 = vpop.f32.mrf.mxu0
    %v74 = vadd.f32 %v29, %v73
    %75 = vmatmul.f32.gmra.mxu0 %v36
    %v76 = vpop.f32.mrf.mxu0
    %v77 = vadd.f32 %v29, %v76
    %78 = vmatmul.f32.gmra.mxu0 %v39
    %v79 = vpop.f32.mrf.mxu0
    %v80 = vadd.f32 %v29, %v79
    %81 = vmatmul.f32.gmra.mxu0 %v42
    %v82 = vpop.f32.mrf.mxu0
    %v83 = vadd.f32 %v29, %v82
    %84 = vmatmul.f32.gmra.mxu0 %v45
    %v85 = vpop.f32.mrf.mxu0
    %v86 = vadd.f32 %v29, %v85
    %87 = vmatmul.f32.gmra.mxu0 %v48
    %v88 = vpop.f32.mrf.mxu0
    %v89 = vadd.f32 %v29, %v88
    %90 = vmatmul.f32.gmra.mxu0 %v51
    %v91 = vpop.f32.mrf.mxu0
    %v92 = vadd.f32 %v29, %v91
    %93 = vmatmul.f32.gmra.mxu0 %v54
    %v94 = vpop.f32.mrf.mxu0
    %v95 = vadd.f32 %v29, %v94
    %96 = vdwg.mxu0
    %97 = vst [vmem:[#allocation2] sm:$0xff] %v74
    %98 = vst [vmem:[#allocation2 + $0x8] sm:$0xff] %v77
    %99 = vst [vmem:[#allocation2 + $0x10] sm:$0xff] %v80
    %100 = vst [vmem:[#allocation2 + $0x18] sm:$0xff] %v83
    %101 = vst [vmem:[#allocation2 + $0x20] sm:$0xff] %v86
    %102 = vst [vmem:[#allocation2 + $0x28] sm:$0xff] %v89
    %103 = vst [vmem:[#allocation2 + $0x30] sm:$0xff] %v92
    %104 = vst [vmem:[#allocation2 + $0x38] sm:$0xff] %v95
    // Predicated region
    $region14: #{tpu_custom_call.1} parent=1 // pred_check
      _
    $region15: #{tpu_custom_call.1} parent=1 // pred_check_branch
      %106 = sbr.rel (0) target = $region17
    $region16: #{tpu_custom_call.1} parent=1 // pred_region
      %108 = vsyncadd [#allocation3], 0
      %s109 = sshll.u32 [#allocation2], 4
      %s110 = int_to_ptr.vmem [resolvable:$true] %s109
      %s111 = sshll.u32 %s3, 4
      %s112 = int_to_ptr.hbm [resolvable:$true] %s111
      %117 = dma.vmem_to_hbm [thread:$0]  %s110, 1024, %s112, [#allocation3], 128, 128, 8
    $region17: #{tpu_custom_call.1} parent=1 // pred_fallthru
      _
    // Predicated region
    $region18: #{tpu_custom_call.1} parent=1 // pred_check
      _
    $region19: #{tpu_custom_call.1} parent=1 // pred_check_branch
      %119 = sbr.rel (0) target = $region21
    $region20: #{tpu_custom_call.1} parent=1 // pred_region
      %121 = dma.done [#allocation3], 1024
    $region21: #{tpu_custom_call.1} parent=1 // pred_fallthru
      _
    %122 = vsyncpa [#allocation3], 1

</llo_original>
